<compile_context>
chip_gen: v6e
topology: v6e:2x2x1
jax: 0.10.0
libtpu: 0.0.40
codegen_flags: <defaults>
</compile_context>

<pallas_src>
import functools

import jax
import jax.numpy as jnp
from jax import lax
from jax.experimental import pallas as pl
from jax.experimental.pallas import tpu as pltpu

_LANES = 128      # vreg lane width  -> feature-dim padding granularity
_SUBLANES = 8     # f32 sublane count -> batch-dim padding granularity


def _round_up(n, m):
    return ((n + m - 1) // m) * m


def _vmem_capacity_bytes():
    try:
        return int(pltpu.get_tpu_info().vmem_capacity_bytes)
    except Exception:
        return 64 << 20   # conservative fallback: v7x per-core VMEM


# ---------------------------------------------------------------------------
# Kernel
# ---------------------------------------------------------------------------
def _mlp_kernel(gather_c, x_ref, *refs):
    """Fused MLP: chain of (x @ W + b) with ReLU between layers.

    refs layout:
      gather_c=False: (w0, b0, ..., wL, bL, out_ref)
      gather_c=True : (c_ref, w0, b0, ..., wL, bL, out_ref), c_ref (tile_b,1) i32

    All feature dims are padded to multiples of 128 by the wrapper (padded
    weight rows/cols and bias entries are zero, so padded columns stay zero).
    NOTE: rows of a zero-padded trailing batch tile are garbage-free here
    (wrapper zero-pads x), but nothing in this kernel may reduce across rows —
    padded rows are sliced off by the wrapper.
    """
    if gather_c:
        c_ref = refs[0]
        param_refs = refs[1:-1]
    else:
        c_ref = None
        param_refs = refs[:-1]
    out_ref = refs[-1]
    n_layers = len(param_refs) // 2

    h = x_ref[...]
    for i in range(n_layers):
        w = param_refs[2 * i][...]
        b = param_refs[2 * i + 1][...]            # (1, dout_p), already f32
        # MXU consumes the weights' native dtype (bf16 full-rate on v6e/v7x);
        # accumulation stays f32 via preferred_element_type.
        acc = jnp.dot(h.astype(w.dtype), w, preferred_element_type=jnp.float32)
        acc = acc + b
        if i < n_layers - 1:                      # ReLU on all but last layer
            acc = jnp.maximum(acc, 0.0)
        h = acc

    if gather_c:
        # Fused out[r, c[r]]: one-hot select on lanes + row reduce (XLU).
        col = lax.broadcasted_iota(jnp.int32, h.shape, 1)
        sel = jnp.where(col == c_ref[...], h, 0.0)
        out_ref[...] = jnp.sum(sel, axis=1, keepdims=True).astype(out_ref.dtype)
    else:
        out_ref[...] = h.astype(out_ref.dtype)


# ---------------------------------------------------------------------------
# Parameter construction / preparation (call ONCE at init, not per forward)
# ---------------------------------------------------------------------------
def init_mlp_params(key, input_size, output_size, nhidden=3, dhidden=16):
    """Deterministic init matching the PyTorch module's layer shapes."""
    if isinstance(dhidden, int):
        dhidden = [dhidden] * (nhidden + 1)
    dims = [input_size] + list(dhidden) + [output_size]
    params = []
    for i in range(len(dims) - 1):
        din, dout = dims[i], dims[i + 1]
        key, kw, kb = jax.random.split(key, 3)
        bound = 1.0 / jnp.sqrt(jnp.float32(din))
        # stored as (din, dout) so the kernel does x @ W
        w = jax.random.uniform(kw, (din, dout), jnp.float32, -bound, bound)
        b = jax.random.uniform(kb, (1, dout), jnp.float32, -bound, bound)
        params.append((w, b))
    return params


def prepare_params(params, dtype=jnp.float32):
    """Pad every layer to lane-dense (multiple-of-128) feature dims and flatten.

    Call once at init and reuse the returned tuple on every forward (the
    pad/cast is HBM traffic comparable to the kernel itself at these sizes).
    Use dtype=jnp.bfloat16 on v6e/v7x for full-rate MXU; biases stay f32 so
    the kernel never re-casts them.
    """
    flat = []
    for w, b in params:
        din, dout = w.shape
        din_p = _round_up(din, _LANES)
        dout_p = _round_up(dout, _LANES)
        w_p = jnp.pad(w.astype(dtype), ((0, din_p - din), (0, dout_p - dout)))
        b_p = jnp.pad(b.astype(jnp.float32), ((0, 0), (0, dout_p - dout)))
        flat += [w_p, b_p]
    return tuple(flat)


# ---------------------------------------------------------------------------
# pallas_call wrapper
# ---------------------------------------------------------------------------
@functools.partial(jax.jit, static_argnames=("output_size", "tile_b", "gather"))
def mlp_pallas(x, c, params_flat, *, output_size, tile_b=None, gather=False):
    """x: (B, input_size). params_flat: padded (w0, b0, ...) from prepare_params.
    If gather=True, c is (B,) int indices and the result is (B, 1)."""
    B, din = x.shape
    din_p = params_flat[0].shape[0]
    dout_p = params_flat[-2].shape[1]
    assert din_p == _round_up(din, _LANES), "params not padded for this input"

    B_p0 = _round_up(B, _SUBLANES)

    # --- batch tile selection (MXU / pipeline sized, multiple of 8) ---------
    if tile_b is None:
        if B_p0 <= 16:
            tile_b = B_p0                       # nothing to gain from splitting
        elif B_p0 <= 256:
            # >= 2 grid steps so ("parallel",) can shard across v7x's 2 TCs;
            # harmless on single-TC v5e/v6e.
            tile_b = _round_up(-(-B_p0 // 2), _SUBLANES)
        elif B_p0 <= 1024:
            tile_b = 128
        elif B_p0 <= 2048:
            tile_b = 256
        else:
            tile_b = 512                        # ~85% of HBM roofline at 512-wide
    tile_b = min(tile_b, B_p0)
    assert tile_b % _SUBLANES == 0

    # --- VMEM budget: single-buffered params + double-buffered I/O ----------
    itemsize = jnp.dtype(x.dtype).itemsize
    params_bytes = sum(int(p.size) * jnp.dtype(p.dtype).itemsize
                       for p in params_flat)          # resident, single-buffered
    out_cols = 1 if gather else dout_p
    max_width = max(int(p.shape[-1]) for p in params_flat[::2])
    cap = max(32 << 20, (_vmem_capacity_bytes() * 3) // 4)  # ~96MiB v5e/v6e, ~48MiB v7x

    def _need(tb):
        io = 2 * tb * (din_p * itemsize + out_cols * itemsize + 4)  # x, out, c(i32)
        act = 4 * tb * max_width * 4                                # f32 act slack
        return params_bytes + io + act + (4 << 20)

    while _need(tile_b) > cap and tile_b > _SUBLANES:
        tile_b = max(_SUBLANES, _round_up(tile_b // 2, _SUBLANES))
    # TODO(synk): if params_bytes alone exceeds `cap` (very large layers on
    # v7x's 64 MiB VMEM), tile the widest layer's N with a second 'arbitrary'
    # grid axis instead of relying on fully resident weights.
    vmem_limit = int(min(max(_need(tile_b), 32 << 20), cap))

    # --- pad inputs (no partial blocks: B_p is a multiple of tile_b) --------
    # allow_input_fusion lets XLA fuse these pads into the pallas_call input
    # DMA instead of a separate HBM round trip; prefer pre-padded x upstream.
    B_p = _round_up(B, tile_b)
    if (B_p, din_p) != (B, din):
        x = jnp.pad(x, ((0, B_p - B), (0, din_p - din)))

    grid = (B_p // tile_b,)

    in_specs = [pl.BlockSpec((tile_b, din_p), lambda i: (i, 0))]
    inputs = [x]
    if gather:
        c_col = jnp.pad(c.astype(jnp.int32)[:, None], ((0, B_p - B), (0, 0)))
        in_specs.append(pl.BlockSpec((tile_b, 1), lambda i: (i, 0)))
        inputs.append(c_col)
    for p in params_flat:
        # Grid-invariant weights/biases: fully VMEM-resident, single-buffered.
        in_specs.append(pl.BlockSpec(p.shape, lambda i: (0, 0),
                                     pipeline_mode=pl.Buffered(1)))
        inputs.append(p)

    if gather:
        out_shape = jax.ShapeDtypeStruct((B_p, 1), x.dtype)
        out_spec = pl.BlockSpec((tile_b, 1), lambda i: (i, 0))
    else:
        out_shape = jax.ShapeDtypeStruct((B_p, dout_p), x.dtype)
        out_spec = pl.BlockSpec((tile_b, dout_p), lambda i: (i, 0))

    allow_fusion = [True] + ([True] if gather else []) + [False] * len(params_flat)

    out_p = pl.pallas_call(
        functools.partial(_mlp_kernel, gather),
        out_shape=out_shape,
        grid_spec=pltpu.PrefetchScalarGridSpec(
            num_scalar_prefetch=0,
            grid=grid,
            in_specs=in_specs,
            out_specs=out_spec,
        ),
        compiler_params=pltpu.CompilerParams(
            dimension_semantics=("parallel",),
            vmem_limit_bytes=vmem_limit,
            allow_input_fusion=allow_fusion,
        ),
    )(*inputs)

    if gather:
        return out_p[:B, :]
    return out_p[:B, :output_size]


def mlp_forward(x, params_flat, output_size, c=None, *, tile_b=None):
    """Matches MLP.forward semantics. x must be 2-D.
    params_flat must come from prepare_params (hoisted out of the hot path)."""
    assert x.ndim == 2
    return mlp_pallas(x, c, params_flat, output_size=output_size,
                      tile_b=tile_b, gather=c is not None)


# ---------------------------------------------------------------------------
# Reference + self-test
# ---------------------------------------------------------------------------
def _mlp_reference(x, params):
    h = x
    for i, (w, b) in enumerate(params):
        h = h @ w + b
        if i < len(params) - 1:
            h = jnp.maximum(h, 0.0)
    return h


if __name__ == "__main__":
    key = jax.random.PRNGKey(0)
    k_params, k_x, k_c, k_params2, k_x2, k_x3 = jax.random.split(key, 6)

    # ---- config 1: default module shapes (batch=8, in=8, out=4, dh=16) ----
    batch, input_size, output_size = 8, 8, 4
    params = init_mlp_params(k_params, input_size, output_size,
                             nhidden=3, dhidden=16)
    params_flat = prepare_params(params)                 # prepared ONCE
    x = jax.random.normal(k_x, (batch, input_size), jnp.float32)

    out = jax.block_until_ready(mlp_forward(x, params_flat, output_size))
    ref = _mlp_reference(x, params)
    assert out.shape == (batch, output_size)
    assert jnp.allclose(out, ref, atol=1e-4, rtol=1e-4)

    # fused c-gather path
    c = jax.random.randint(k_c, (batch,), 0, output_size)
    out_c = jax.block_until_ready(mlp_forward(x, params_flat, output_size, c))
    ref_c = ref[jnp.arange(batch), c][:, None]
    assert out_c.shape == (batch, 1)
    assert jnp.allclose(out_c, ref_c, atol=1e-4, rtol=1e-4)

    # ---- config 2: odd sizes, exercises row/lane padding + 2-step grid -----
    batch2, in2, out2 = 20, 10, 5
    params2 = init_mlp_params(k_params2, in2, out2,
                              nhidden=2, dhidden=[24, 40, 12])
    params2_flat = prepare_params(params2)
    x2 = jax.random.normal(k_x2, (batch2, in2), jnp.float32)
    o2 = jax.block_until_ready(mlp_forward(x2, params2_flat, out2))
    r2 = _mlp_reference(x2, params2)
    assert o2.shape == (batch2, out2)
    assert jnp.allclose(o2, r2, atol=1e-4, rtol=1e-4)

    # ---- config 3: bf16 params + mid-size batch (multi-step parallel grid) -
    params_bf16 = prepare_params(params, dtype=jnp.bfloat16)
    batch3 = 200
    x3 = jax.random.normal(k_x3, (batch3, input_size), jnp.float32)
    o3 = jax.block_until_ready(mlp_forward(x3, params_bf16, output_size))
    r3 = _mlp_reference(x3, params)
    assert o3.shape == (batch3, output_size)
    # bf16 weights -> inter-layer precision is bf16 (f32 MXU accumulation);
    # looser tolerance for this path.
    assert jnp.allclose(o3, r3, atol=5e-2, rtol=5e-2)

    print("KERNEL_OK")
</pallas_src>

<mosaic_0001>
module attributes {stable_mosaic.version = 11 : i64} {
  func.func @_mlp_kernel(%arg0: i32, %arg1: memref<8x128xf32, #tpu.memory_space<vmem>>, %arg2: memref<128x128xf32, #tpu.memory_space<vmem>>, %arg3: memref<1x128xf32, #tpu.memory_space<vmem>>, %arg4: memref<128x128xf32, #tpu.memory_space<vmem>>, %arg5: memref<1x128xf32, #tpu.memory_space<vmem>>, %arg6: memref<128x128xf32, #tpu.memory_space<vmem>>, %arg7: memref<1x128xf32, #tpu.memory_space<vmem>>, %arg8: memref<128x128xf32, #tpu.memory_space<vmem>>, %arg9: memref<1x128xf32, #tpu.memory_space<vmem>>, %arg10: memref<128x128xf32, #tpu.memory_space<vmem>>, %arg11: memref<1x128xf32, #tpu.memory_space<vmem>>, %arg12: memref<8x128xf32, #tpu.memory_space<vmem>>) attributes {dimension_semantics = [#tpu.dimension_semantics<parallel>], iteration_bounds = array<i64: 1>, scalar_prefetch = 0 : i64, scratch_operands = 0 : i64, tpu.core_type = #tpu.core_type<tc>, window_params = [{transform_indices = @transform_0, window_bounds = array<i64: 8, 128>}, {pipeline_mode = #tpu.pipeline_mode<synchronous>, transform_indices = @transform_1, window_bounds = array<i64: 128, 128>}, {pipeline_mode = #tpu.pipeline_mode<synchronous>, transform_indices = @transform_2, window_bounds = array<i64: 1, 128>}, {pipeline_mode = #tpu.pipeline_mode<synchronous>, transform_indices = @transform_3, window_bounds = array<i64: 128, 128>}, {pipeline_mode = #tpu.pipeline_mode<synchronous>, transform_indices = @transform_4, window_bounds = array<i64: 1, 128>}, {pipeline_mode = #tpu.pipeline_mode<synchronous>, transform_indices = @transform_5, window_bounds = array<i64: 128, 128>}, {pipeline_mode = #tpu.pipeline_mode<synchronous>, transform_indices = @transform_6, window_bounds = array<i64: 1, 128>}, {pipeline_mode = #tpu.pipeline_mode<synchronous>, transform_indices = @transform_7, window_bounds = array<i64: 128, 128>}, {pipeline_mode = #tpu.pipeline_mode<synchronous>, transform_indices = @transform_8, window_bounds = array<i64: 1, 128>}, {pipeline_mode = #tpu.pipeline_mode<synchronous>, transform_indices = @transform_9, window_bounds = array<i64: 128, 128>}, {pipeline_mode = #tpu.pipeline_mode<synchronous>, transform_indices = @transform_10, window_bounds = array<i64: 1, 128>}, {transform_indices = @transform_11, window_bounds = array<i64: 8, 128>}]} {
    %c0 = arith.constant 0 : index
    %c0_0 = arith.constant 0 : index
    %0 = vector.load %arg1[%c0, %c0_0] : memref<8x128xf32, #tpu.memory_space<vmem>>, vector<8x128xf32>
    %c0_1 = arith.constant 0 : index
    %c0_2 = arith.constant 0 : index
    %1 = vector.load %arg2[%c0_1, %c0_2] : memref<128x128xf32, #tpu.memory_space<vmem>>, vector<128x128xf32>
    %c0_3 = arith.constant 0 : index
    %c0_4 = arith.constant 0 : index
    %2 = vector.load %arg3[%c0_3, %c0_4] : memref<1x128xf32, #tpu.memory_space<vmem>>, vector<1x128xf32>
    %cst = arith.constant dense<0.000000e+00> : vector<8x128xf32>
    %3 = tpu.matmul %0, %1, %cst {dimension_numbers = #tpu.dot_dimension_numbers<[1], [0], [0], [1], [0, 0, 1, 1], [], []>} : vector<8x128xf32>, vector<128x128xf32>, vector<8x128xf32> -> vector<8x128xf32>
    %4 = vector.broadcast %2 : vector<1x128xf32> to vector<8x128xf32>
    %5 = arith.addf %3, %4 : vector<8x128xf32>
    %cst_5 = arith.constant 0.000000e+00 : f32
    %6 = vector.broadcast %cst_5 : f32 to vector<8x128xf32>
    %7 = arith.maximumf %5, %6 : vector<8x128xf32>
    %c0_6 = arith.constant 0 : index
    %c0_7 = arith.constant 0 : index
    %8 = vector.load %arg4[%c0_6, %c0_7] : memref<128x128xf32, #tpu.memory_space<vmem>>, vector<128x128xf32>
    %c0_8 = arith.constant 0 : index
    %c0_9 = arith.constant 0 : index
    %9 = vector.load %arg5[%c0_8, %c0_9] : memref<1x128xf32, #tpu.memory_space<vmem>>, vector<1x128xf32>
    %cst_10 = arith.constant dense<0.000000e+00> : vector<8x128xf32>
    %10 = tpu.matmul %7, %8, %cst_10 {dimension_numbers = #tpu.dot_dimension_numbers<[1], [0], [0], [1], [0, 0, 1, 1], [], []>} : vector<8x128xf32>, vector<128x128xf32>, vector<8x128xf32> -> vector<8x128xf32>
    %11 = vector.broadcast %9 : vector<1x128xf32> to vector<8x128xf32>
    %12 = arith.addf %10, %11 : vector<8x128xf32>
    %cst_11 = arith.constant 0.000000e+00 : f32
    %13 = vector.broadcast %cst_11 : f32 to vector<8x128xf32>
    %14 = arith.maximumf %12, %13 : vector<8x128xf32>
    %c0_12 = arith.constant 0 : index
    %c0_13 = arith.constant 0 : index
    %15 = vector.load %arg6[%c0_12, %c0_13] : memref<128x128xf32, #tpu.memory_space<vmem>>, vector<128x128xf32>
    %c0_14 = arith.constant 0 : index
    %c0_15 = arith.constant 0 : index
    %16 = vector.load %arg7[%c0_14, %c0_15] : memref<1x128xf32, #tpu.memory_space<vmem>>, vector<1x128xf32>
    %cst_16 = arith.constant dense<0.000000e+00> : vector<8x128xf32>
    %17 = tpu.matmul %14, %15, %cst_16 {dimension_numbers = #tpu.dot_dimension_numbers<[1], [0], [0], [1], [0, 0, 1, 1], [], []>} : vector<8x128xf32>, vector<128x128xf32>, vector<8x128xf32> -> vector<8x128xf32>
    %18 = vector.broadcast %16 : vector<1x128xf32> to vector<8x128xf32>
    %19 = arith.addf %17, %18 : vector<8x128xf32>
    %cst_17 = arith.constant 0.000000e+00 : f32
    %20 = vector.broadcast %cst_17 : f32 to vector<8x128xf32>
    %21 = arith.maximumf %19, %20 : vector<8x128xf32>
    %c0_18 = arith.constant 0 : index
    %c0_19 = arith.constant 0 : index
    %22 = vector.load %arg8[%c0_18, %c0_19] : memref<128x128xf32, #tpu.memory_space<vmem>>, vector<128x128xf32>
    %c0_20 = arith.constant 0 : index
    %c0_21 = arith.constant 0 : index
    %23 = vector.load %arg9[%c0_20, %c0_21] : memref<1x128xf32, #tpu.memory_space<vmem>>, vector<1x128xf32>
    %cst_22 = arith.constant dense<0.000000e+00> : vector<8x128xf32>
    %24 = tpu.matmul %21, %22, %cst_22 {dimension_numbers = #tpu.dot_dimension_numbers<[1], [0], [0], [1], [0, 0, 1, 1], [], []>} : vector<8x128xf32>, vector<128x128xf32>, vector<8x128xf32> -> vector<8x128xf32>
    %25 = vector.broadcast %23 : vector<1x128xf32> to vector<8x128xf32>
    %26 = arith.addf %24, %25 : vector<8x128xf32>
    %cst_23 = arith.constant 0.000000e+00 : f32
    %27 = vector.broadcast %cst_23 : f32 to vector<8x128xf32>
    %28 = arith.maximumf %26, %27 : vector<8x128xf32>
    %c0_24 = arith.constant 0 : index
    %c0_25 = arith.constant 0 : index
    %29 = vector.load %arg10[%c0_24, %c0_25] : memref<128x128xf32, #tpu.memory_space<vmem>>, vector<128x128xf32>
    %c0_26 = arith.constant 0 : index
    %c0_27 = arith.constant 0 : index
    %30 = vector.load %arg11[%c0_26, %c0_27] : memref<1x128xf32, #tpu.memory_space<vmem>>, vector<1x128xf32>
    %cst_28 = arith.constant dense<0.000000e+00> : vector<8x128xf32>
    %31 = tpu.matmul %28, %29, %cst_28 {dimension_numbers = #tpu.dot_dimension_numbers<[1], [0], [0], [1], [0, 0, 1, 1], [], []>} : vector<8x128xf32>, vector<128x128xf32>, vector<8x128xf32> -> vector<8x128xf32>
    %32 = vector.broadcast %30 : vector<1x128xf32> to vector<8x128xf32>
    %33 = arith.addf %31, %32 : vector<8x128xf32>
    %c0_29 = arith.constant 0 : index
    %c0_30 = arith.constant 0 : index
    %34 = vector.load %arg12[%c0_29, %c0_30] : memref<8x128xf32, #tpu.memory_space<vmem>>, vector<8x128xf32>
    tpu.vector_store %arg12[%c0_29, %c0_30], %33 {strides = array<i32>} : memref<8x128xf32, #tpu.memory_space<vmem>>, vector<8x128xf32>,
    return
  }
  func.func @transform_0(%arg0: i32) -> (i32, i32) {
    %c0_i32 = arith.constant 0 : i32
    %c0_i32_0 = arith.constant 0 : i32
    return %arg0, %c0_i32 : i32, i32
  }
  func.func @transform_1(%arg0: i32) -> (i32, i32) {
    %c0_i32 = arith.constant 0 : i32
    %c0_i32_0 = arith.constant 0 : i32
    %c0_i32_1 = arith.constant 0 : i32
    return %c0_i32, %c0_i32_0 : i32, i32
  }
  func.func @transform_2(%arg0: i32) -> (i32, i32) {
    %c0_i32 = arith.constant 0 : i32
    %c0_i32_0 = arith.constant 0 : i32
    %c0_i32_1 = arith.constant 0 : i32
    return %c0_i32, %c0_i32_0 : i32, i32
  }
  func.func @transform_3(%arg0: i32) -> (i32, i32) {
    %c0_i32 = arith.constant 0 : i32
    %c0_i32_0 = arith.constant 0 : i32
    %c0_i32_1 = arith.constant 0 : i32
    return %c0_i32, %c0_i32_0 : i32, i32
  }
  func.func @transform_4(%arg0: i32) -> (i32, i32) {
    %c0_i32 = arith.constant 0 : i32
    %c0_i32_0 = arith.constant 0 : i32
    %c0_i32_1 = arith.constant 0 : i32
    return %c0_i32, %c0_i32_0 : i32, i32
  }
  func.func @transform_5(%arg0: i32) -> (i32, i32) {
    %c0_i32 = arith.constant 0 : i32
    %c0_i32_0 = arith.constant 0 : i32
    %c0_i32_1 = arith.constant 0 : i32
    return %c0_i32, %c0_i32_0 : i32, i32
  }
  func.func @transform_6(%arg0: i32) -> (i32, i32) {
    %c0_i32 = arith.constant 0 : i32
    %c0_i32_0 = arith.constant 0 : i32
    %c0_i32_1 = arith.constant 0 : i32
    return %c0_i32, %c0_i32_0 : i32, i32
  }
  func.func @transform_7(%arg0: i32) -> (i32, i32) {
    %c0_i32 = arith.constant 0 : i32
    %c0_i32_0 = arith.constant 0 : i32
    %c0_i32_1 = arith.constant 0 : i32
    return %c0_i32, %c0_i32_0 : i32, i32
  }
  func.func @transform_8(%arg0: i32) -> (i32, i32) {
    %c0_i32 = arith.constant 0 : i32
    %c0_i32_0 = arith.constant 0 : i32
    %c0_i32_1 = arith.constant 0 : i32
    return %c0_i32, %c0_i32_0 : i32, i32
  }
  func.func @transform_9(%arg0: i32) -> (i32, i32) {
    %c0_i32 = arith.constant 0 : i32
    %c0_i32_0 = arith.constant 0 : i32
    %c0_i32_1 = arith.constant 0 : i32
    return %c0_i32, %c0_i32_0 : i32, i32
  }
  func.func @transform_10(%arg0: i32) -> (i32, i32) {
    %c0_i32 = arith.constant 0 : i32
    %c0_i32_0 = arith.constant 0 : i32
    %c0_i32_1 = arith.constant 0 : i32
    return %c0_i32, %c0_i32_0 : i32, i32
  }
  func.func @transform_11(%arg0: i32) -> (i32, i32) {
    %c0_i32 = arith.constant 0 : i32
    %c0_i32_0 = arith.constant 0 : i32
    return %arg0, %c0_i32 : i32, i32
  }
}

</mosaic_0001>

<llo_original>
// kernel: mlp_pallas.2
$region0: #{mlp_pallas.2}
  #allocation0 [shape = 'u32[]', space=smem, size = 0x4, offset = 0x4, fixed_abs, tag = 'smem constant byte address 0x4 - core index']
  #allocation1 [shape = 'u32[144,128]{1,0:T(1,128)}', space=vmem, size = 0x12000, scoped, tag = 'internal scratch']
  #allocation2 [shape = 'u32[2048]{0}', space=vmem, size = 0x2000, scoped, tag = 'scoped memory for mlp_pallas.2']
  #allocation3 [shape = 'u32[2048]{0}', space=vmem, size = 0x2000, scoped, tag = 'scoped memory for mlp_pallas.2']
  #allocation4 [shape = 'u32[2048]{0}', space=vmem, size = 0x2000, scoped, tag = 'scoped memory for mlp_pallas.2']
  #allocation5 [shape = 'u32[2048]{0}', space=vmem, size = 0x2000, scoped, tag = 'scoped memory for mlp_pallas.2']
  #allocation6 [shape = 'u32[2048]{0}', space=vmem, size = 0x2000, scoped, tag = 'scoped memory for mlp_pallas.2']
  %s0 = inlined_call_operand.hbm [shape: f32[128,128], index: 0, kind: input, shape index: {}]
  %s1 = inlined_call_operand.vmem [shape: f32[1,128], index: 1, kind: input, shape index: {}]
  %s2 = inlined_call_operand.hbm [shape: f32[128,128], index: 2, kind: input, shape index: {}]
  %s3 = inlined_call_operand.vmem [shape: f32[1,128], index: 3, kind: input, shape index: {}]
  %s4 = inlined_call_operand.hbm [shape: f32[128,128], index: 4, kind: input, shape index: {}]
  %s5 = inlined_call_operand.vmem [shape: f32[1,128], index: 5, kind: input, shape index: {}]
  %s6 = inlined_call_operand.hbm [shape: f32[128,128], index: 6, kind: input, shape index: {}]
  %s7 = inlined_call_operand.vmem [shape: f32[1,128], index: 7, kind: input, shape index: {}]
  %s8 = inlined_call_operand.hbm [shape: f32[128,128], index: 8, kind: input, shape index: {}]
  %s9 = inlined_call_operand.vmem [shape: f32[1,128], index: 9, kind: input, shape index: {}]
  %s10 = inlined_call_operand.hbm [shape: f32[8,8], index: 10, kind: input, shape index: {}]
  %s11 = inlined_call_operand.<no memory space> [shape: f32[], index: 11, kind: input, shape index: {}]
  %s12 = inlined_call_operand.vmem [shape: f32[8,128], index: 12, kind: output, shape index: {}]
  %s13 = sld [smem:[#allocation0]]
  $region78: #{mlp_pallas.2} parent=0
    _
  %s15 = ssub.s32 1, %s13
  %s16 = scalar_select 0, %s15, %s13
  %v17 = vstv %s11
  $region1: #{mlp_pallas.2} parent=0
    #allocation7 [shape = 'u8[4096]{0}', space=vmem, size = 0x1000, scoped, tag = 'operand span for operand 10']
    #allocation8 [shape = 's32[1]{0}', space=sflag, size = 0x4, scoped, tag = 'scoped memory for mlp_pallas.2']
    #allocation9 [shape = 'u8[65536]{0}', space=vmem, size = 0x10000, scoped, tag = 'input window, operand 1, single buffered']
    #allocation10 [shape = 's32[1]{0}', space=sflag, size = 0x4, scoped, tag = 'scoped memory for mlp_pallas.2']
    #allocation11 [shape = 'u8[65536]{0}', space=vmem, size = 0x10000, scoped, tag = 'input window, operand 3, single buffered']
    #allocation12 [shape = 'u8[65536]{0}', space=vmem, size = 0x10000, scoped, tag = 'input window, operand 5, single buffered']
    #allocation13 [shape = 's32[1]{0}', space=sflag, size = 0x4, scoped, tag = 'scoped memory for mlp_pallas.2']
    #allocation14 [shape = 'u8[65536]{0}', space=vmem, size = 0x10000, scoped, tag = 'input window, operand 7, single buffered']
    #allocation15 [shape = 'u8[65536]{0}', space=vmem, size = 0x10000, scoped, tag = 'input window, operand 9, single buffered']
    #allocation16 [shape = 's32[1]{0}', space=sflag, size = 0x4, scoped, tag = 'scoped memory for mlp_pallas.2']
    #allocation17 [shape = 'u8[4096]{0}', space=vmem, size = 0x1000, dematerialized = true, scoped, tag = 'FusionAdapter Buffer %fusion.1 = f32[8,128]{1,0:T(8,128)} fusion(%param_10.1, %param_11), kind=kLoop, calls=%fused_computation.1.clone, metadata={op_name="jit(mlp_pallas)/jit(_pad)/pad" stack_frame_id=1}']
    %18 = vsyncpa [#allocation8], 0
    %19 = vsyncpa [#allocation10], 0
    %20 = vsyncpa [#allocation13], 0
    %21 = vsyncpa [#allocation16], 0
    // Predicated region
    $region2: #{mlp_pallas.2} parent=1 // pred_check
      _
    $region3: #{mlp_pallas.2} parent=1 // pred_check_branch
      %23 = sbr.rel (0) target = $region5
    $region4: #{mlp_pallas.2} parent=1 // pred_region
      %s25 = ssub.s32 128, 128
      %26 = vsyncadd [#allocation8], %s25
      %s28 = sshll.u32 [#allocation7], 4
      %s29 = int_to_ptr.vmem [resolvable:$true] %s28
      %31 = dma.hbm_to_vmem [thread:$0]  %s10, 128, %s29, [#allocation8]
    $region5: #{mlp_pallas.2} parent=1 // pred_fallthru
      _
    // Predicated region
    $region6: #{mlp_pallas.2} parent=1 // pred_check
      _
    $region7: #{mlp_pallas.2} parent=1 // pred_check_branch
      %33 = sbr.rel (0) target = $region9
    $region8: #{mlp_pallas.2} parent=1 // pred_region
      %s35 = ssub.s32 2048, 2048
      %36 = vsyncadd [#allocation10], %s35
      %s37 = sshll.u32 [#allocation9], 4
      %s38 = int_to_ptr.vmem [resolvable:$true] %s37
      %43 = dma.hbm_to_vmem [thread:$0]  %s0, 2048, %s38, [#allocation10], 128, 128, 8
    $region9: #{mlp_pallas.2} parent=1 // pred_fallthru
      _
    // Predicated region
    $region10: #{mlp_pallas.2} parent=1 // pred_check
      _
    $region11: #{mlp_pallas.2} parent=1 // pred_check_branch
      %45 = sbr.rel (0) target = $region13
    $region12: #{mlp_pallas.2} parent=1 // pred_region
      _
    $region13: #{mlp_pallas.2} parent=1 // pred_fallthru
      _
    // Predicated region
    $region14: #{mlp_pallas.2} parent=1 // pred_check
      _
    $region15: #{mlp_pallas.2} parent=1 // pred_check_branch
      %47 = sbr.rel (0) target = $region17
    $region16: #{mlp_pallas.2} parent=1 // pred_region
      %s49 = ssub.s32 2048, 2048
      %50 = vsyncadd [#allocation10], %s49
      %s51 = sshll.u32 [#allocation11], 4
      %s52 = int_to_ptr.vmem [resolvable:$true] %s51
      %57 = dma.hbm_to_vmem [thread:$0]  %s2, 2048, %s52, [#allocation10], 128, 128, 8
    $region17: #{mlp_pallas.2} parent=1 // pred_fallthru
      _
    // Predicated region
    $region18: #{mlp_pallas.2} parent=1 // pred_check
      _
    $region19: #{mlp_pallas.2} parent=1 // pred_check_branch
      %59 = sbr.rel (0) target = $region21
    $region20: #{mlp_pallas.2} parent=1 // pred_region
      _
    $region21: #{mlp_pallas.2} parent=1 // pred_fallthru
      _
    // Predicated region
    $region22: #{mlp_pallas.2} parent=1 // pred_check
      _
    $region23: #{mlp_pallas.2} parent=1 // pred_check_branch
      %61 = sbr.rel (0) target = $region25
    $region24: #{mlp_pallas.2} parent=1 // pred_region
      %s63 = ssub.s32 2048, 2048
      %64 = vsyncadd [#allocation13], %s63
      %s65 = sshll.u32 [#allocation12], 4
      %s66 = int_to_ptr.vmem [resolvable:$true] %s65
      %71 = dma.hbm_to_vmem [thread:$0]  %s4, 2048, %s66, [#allocation13], 128, 128, 8
    $region25: #{mlp_pallas.2} parent=1 // pred_fallthru
      _
    // Predicated region
    $region26: #{mlp_pallas.2} parent=1 // pred_check
      _
    $region27: #{mlp_pallas.2} parent=1 // pred_check_branch
      %73 = sbr.rel (0) target = $region29
    $region28: #{mlp_pallas.2} parent=1 // pred_region
      _
    $region29: #{mlp_pallas.2} parent=1 // pred_fallthru
      _
    // Predicated region
    $region30: #{mlp_pallas.2} parent=1 // pred_check
      _
    $region31: #{mlp_pallas.2} parent=1 // pred_check_branch
      %75 = sbr.rel (0) target = $region33
    $region32: #{mlp_pallas.2} parent=1 // pred_region
      %s77 = ssub.s32 2048, 2048
      %78 = vsyncadd [#allocation13], %s77
      %s79 = sshll.u32 [#allocation14], 4
      %s80 = int_to_ptr.vmem [resolvable:$true] %s79
      %85 = dma.hbm_to_vmem [thread:$0]  %s6, 2048, %s80, [#allocation13], 128, 128, 8
    $region33: #{mlp_pallas.2} parent=1 // pred_fallthru
      _
    // Predicated region
    $region34: #{mlp_pallas.2} parent=1 // pred_check
      _
    $region35: #{mlp_pallas.2} parent=1 // pred_check_branch
      %87 = sbr.rel (0) target = $region37
    $region36: #{mlp_pallas.2} parent=1 // pred_region
      _
    $region37: #{mlp_pallas.2} parent=1 // pred_fallthru
      _
    // Predicated region
    $region38: #{mlp_pallas.2} parent=1 // pred_check
      _
    $region39: #{mlp_pallas.2} parent=1 // pred_check_branch
      %89 = sbr.rel (0) target = $region41
    $region40: #{mlp_pallas.2} parent=1 // pred_region
      %s91 = ssub.s32 2048, 2048
      %92 = vsyncadd [#allocation16], %s91
      %s93 = sshll.u32 [#allocation15], 4
      %s94 = int_to_ptr.vmem [resolvable:$true] %s93
      %99 = dma.hbm_to_vmem [thread:$0]  %s8, 2048, %s94, [#allocation16], 128, 128, 8
    $region41: #{mlp_pallas.2} parent=1 // pred_fallthru
      _
    // Predicated region
    $region42: #{mlp_pallas.2} parent=1 // pred_check
      _
    $region43: #{mlp_pallas.2} parent=1 // pred_check_branch
      %101 = sbr.rel (0) target = $region45
    $region44: #{mlp_pallas.2} parent=1 // pred_region
      _
    $region45: #{mlp_pallas.2} parent=1 // pred_fallthru
      _
    // Predicated region
    $region46: #{mlp_pallas.2} parent=1 // pred_check
      _
    $region47: #{mlp_pallas.2} parent=1 // pred_check_branch
      %103 = sbr.rel (0) target = $region49
    $region48: #{mlp_pallas.2} parent=1 // pred_region
      %104 = dma.done [#allocation8], 128
    $region49: #{mlp_pallas.2} parent=1 // pred_fallthru
      _
    // Predicated region
    $region50: #{mlp_pallas.2} parent=1 // pred_check
      _
    $region51: #{mlp_pallas.2} parent=1 // pred_check_branch
      %106 = sbr.rel (0) target = $region53
    $region52: #{mlp_pallas.2} parent=1 // pred_region
      %107 = dma.done [#allocation10], 2048
    $region53: #{mlp_pallas.2} parent=1 // pred_fallthru
      _
    // Predicated region
    $region54: #{mlp_pallas.2} parent=1 // pred_check
      _
    $region55: #{mlp_pallas.2} parent=1 // pred_check_branch
      %109 = sbr.rel (0) target = $region57
    $region56: #{mlp_pallas.2} parent=1 // pred_region
      %110 = dma.done [#allocation10], 2048
    $region57: #{mlp_pallas.2} parent=1 // pred_fallthru
      _
    // Predicated region
    $region58: #{mlp_pallas.2} parent=1 // pred_check
      _
    $region59: #{mlp_pallas.2} parent=1 // pred_check_branch
      %112 = sbr.rel (0) target = $region61
    $region60: #{mlp_pallas.2} parent=1 // pred_region
      %113 = dma.done [#allocation13], 2048
    $region61: #{mlp_pallas.2} parent=1 // pred_fallthru
      _
    // Predicated region
    $region62: #{mlp_pallas.2} parent=1 // pred_check
      _
    $region63: #{mlp_pallas.2} parent=1 // pred_check_branch
      %115 = sbr.rel (0) target = $region65
    $region64: #{mlp_pallas.2} parent=1 // pred_region
      %116 = dma.done [#allocation13], 2048
    $region65: #{mlp_pallas.2} parent=1 // pred_fallthru
      _
    // Predicated region
    $region66: #{mlp_pallas.2} parent=1 // pred_check
      _
    $region67: #{mlp_pallas.2} parent=1 // pred_check_branch
      %118 = sbr.rel (0) target = $region69
    $region68: #{mlp_pallas.2} parent=1 // pred_region
      %119 = dma.done [#allocation16], 2048
    $region69: #{mlp_pallas.2} parent=1 // pred_fallthru
      _
    %v120 = vld [vmem:[#allocation7] sm:$0xff]
    %v121 = vlaneseq
    %v122 = vand.u32 %v121, 127
    %vm124 = vcmp.lt.s32.totalorder %v122, 8
    %v125 = vsel %vm124, %v120, %v17
    %s127 = ssub.s32 256, 1
    %128 = vst [vmem:[#allocation17] sm:%s127] %v125
    %v129 = vld [vmem:[#allocation17] sm:$0xff]
    %v130 = vld [vmem:[#allocation9] sm:$0xff]
    %v131 = vld [vmem:[#allocation9 + $0x8] sm:$0xff]
    %v132 = vld [vmem:[#allocation9 + $0x10] sm:$0xff]
    %v133 = vld [vmem:[#allocation9 + $0x18] sm:$0xff]
    %v134 = vld [vmem:[#allocation9 + $0x20] sm:$0xff]
    %v135 = vld [vmem:[#allocation9 + $0x28] sm:$0xff]
    %v136 = vld [vmem:[#allocation9 + $0x30] sm:$0xff]
    %v137 = vld [vmem:[#allocation9 + $0x38] sm:$0xff]
    %v138 = vld [vmem:[#allocation9 + $0x40] sm:$0xff]
    %v139 = vld [vmem:[#allocation9 + $0x48] sm:$0xff]
    %v140 = vld [vmem:[#allocation9 + $0x50] sm:$0xff]
    %v141 = vld [vmem:[#allocation9 + $0x58] sm:$0xff]
    %v142 = vld [vmem:[#allocation9 + $0x60] sm:$0xff]
    %v143 = vld [vmem:[#allocation9 + $0x68] sm:$0xff]
    %v144 = vld [vmem:[#allocation9 + $0x70] sm:$0xff]
    %v145 = vld [vmem:[#allocation9 + $0x78] sm:$0xff]
    %v146 = vld [vmem:[%s1] sm:$0x1]
    %v148 = vlaneseq
    %v149 = vshrl.u32 %v148, 7
    %v150 = vsub.s32 0, %v149
    %v151 = vrot.slane %v146, %v150
    %153 = vmatprep.subr.mxu0 0.0
    %154 = vmatpush1.msra.mxu0 %v145
    %155 = vmatprep.subr.mxu0 0.0
    %156 = vmatpush1.msra.mxu0 %v144
    %157 = vmatprep.subr.mxu0 0.0
    %158 = vmatpush1.msra.mxu0 %v143
    %159 = vmatprep.subr.mxu0 0.0
    %160 = vmatpush1.msra.mxu0 %v142
    %161 = vmatprep.subr.mxu0 0.0
    %162 = vmatpush1.msra.mxu0 %v141
    %163 = vmatprep.subr.mxu0 0.0
    %164 = vmatpush1.msra.mxu0 %v140
    %165 = vmatprep.subr.mxu0 0.0
    %166 = vmatpush1.msra.mxu0 %v139
    %167 = vmatprep.subr.mxu0 0.0
    %168 = vmatpush1.msra.mxu0 %v138
    %169 = vmatprep.subr.mxu0 0.0
    %170 = vmatpush1.msra.mxu0 %v137
    %171 = vmatprep.subr.mxu0 0.0
    %172 = vmatpush1.msra.mxu0 %v136
    %173 = vmatprep.subr.mxu0 0.0
    %174 = vmatpush1.msra.mxu0 %v135
    %175 = vmatprep.subr.mxu0 0.0
    %176 = vmatpush1.msra.mxu0 %v134
    %177 = vmatprep.subr.mxu0 0.0
    %178 = vmatpush1.msra.mxu0 %v133
    %179 = vmatprep.subr.mxu0 0.0
    %180 = vmatpush1.msra.mxu0 %v132
    %181 = vmatprep.subr.mxu0 0.0
    %182 = vmatpush1.msra.mxu0 %v131
    %183 = vmatprep.subr.mxu0 0.0
    %184 = vmatpush1.msra.mxu0 %v130
    %185 = vmatprep.subr.mxu0 0.0
    %186 = vmatpush2.msra.mxu0 0.0
    %187 = vmatprep.subr.mxu0 0.0
    %188 = vmatpush2.msra.mxu0 0.0
    %189 = vmatprep.subr.mxu0 0.0
    %190 = vmatpush2.msra.mxu0 0.0
    %191 = vmatprep.subr.mxu0 0.0
    %192 = vmatpush2.msra.mxu0 0.0
    %193 = vmatprep.subr.mxu0 0.0
    %194 = vmatpush2.msra.mxu0 0.0
    %195 = vmatprep.subr.mxu0 0.0
    %196 = vmatpush2.msra.mxu0 0.0
    %197 = vmatprep.subr.mxu0 0.0
    %198 = vmatpush2.msra.mxu0 0.0
    %199 = vmatprep.subr.mxu0 0.0
    %200 = vmatpush2.msra.mxu0 0.0
    %201 = vmatprep.subr.mxu0 0.0
    %202 = vmatpush2.msra.mxu0 0.0
    %203 = vmatprep.subr.mxu0 0.0
    %204 = vmatpush2.msra.mxu0 0.0
    %205 = vmatprep.subr.mxu0 0.0
    %206 = vmatpush2.msra.mxu0 0.0
    %207 = vmatprep.subr.mxu0 0.0
    %208 = vmatpush2.msra.mxu0 0.0
    %209 = vmatprep.subr.mxu0 0.0
    %210 = vmatpush2.msra.mxu0 0.0
    %211 = vmatprep.subr.mxu0 0.0
    %212 = vmatpush2.msra.mxu0 0.0
    %213 = vmatprep.subr.mxu0 0.0
    %214 = vmatpush2.msra.mxu0 0.0
    %215 = vmatprep.subr.mxu0 0.0
    %216 = vmatpush2.msra.mxu0 0.0
    %217 = vmatprep.mubr.f32.mxu0 0.0
    %218 = vmatmul.mubr.f32.gmra.mxu0 %v129
    %v219 = vpop.f32.mrf.mxu0
    %v220 = vadd.f32 %v151, %v219
    %v221 = vpop.f32.mrf.mxu0
    %222 = vdwg.mxu0
    %v223 = vmax.f32 %v220, 0.0
    %v224 = vld [vmem:[#allocation11] sm:$0xff]
    %v225 = vld [vmem:[#allocation11 + $0x8] sm:$0xff]
    %v226 = vld [vmem:[#allocation11 + $0x10] sm:$0xff]
    %v227 = vld [vmem:[#allocation11 + $0x18] sm:$0xff]
    %v228 = vld [vmem:[#allocation11 + $0x20] sm:$0xff]
    %v229 = vld [vmem:[#allocation11 + $0x28] sm:$0xff]
    %v230 = vld [vmem:[#allocation11 + $0x30] sm:$0xff]
    %v231 = vld [vmem:[#allocation11 + $0x38] sm:$0xff]
    %v232 = vld [vmem:[#allocation11 + $0x40] sm:$0xff]
    %v233 = vld [vmem:[#allocation11 + $0x48] sm:$0xff]
    %v234 = vld [vmem:[#allocation11 + $0x50] sm:$0xff]
    %v235 = vld [vmem:[#allocation11 + $0x58] sm:$0xff]
    %v236 = vld [vmem:[#allocation11 + $0x60] sm:$0xff]
    %v237 = vld [vmem:[#allocation11 + $0x68] sm:$0xff]
    %v238 = vld [vmem:[#allocation11 + $0x70] sm:$0xff]
    %v239 = vld [vmem:[#allocation11 + $0x78] sm:$0xff]
    %v240 = vld [vmem:[%s3] sm:$0x1]
    %v242 = vlaneseq
    %v243 = vshrl.u32 %v242, 7
    %v244 = vsub.s32 0, %v243
    %v245 = vrot.slane %v240, %v244
    %247 = vmatprep.subr.mxu0 0.0
    %248 = vmatpush1.msra.mxu0 %v239
    %249 = vmatprep.subr.mxu0 0.0
    %250 = vmatpush1.msra.mxu0 %v238
    %251 = vmatprep.subr.mxu0 0.0
    %252 = vmatpush1.msra.mxu0 %v237
    %253 = vmatprep.subr.mxu0 0.0
    %254 = vmatpush1.msra.mxu0 %v236
    %255 = vmatprep.subr.mxu0 0.0
    %256 = vmatpush1.msra.mxu0 %v235
    %257 = vmatprep.subr.mxu0 0.0
    %258 = vmatpush1.msra.mxu0 %v234
    %259 = vmatprep.subr.mxu0 0.0
    %260 = vmatpush1.msra.mxu0 %v233
    %261 = vmatprep.subr.mxu0 0.0
    %262 = vmatpush1.msra.mxu0 %v232
    %263 = vmatprep.subr.mxu0 0.0
    %264 = vmatpush1.msra.mxu0 %v231
    %265 = vmatprep.subr.mxu0 0.0
    %266 = vmatpush1.msra.mxu0 %v230
    %267 = vmatprep.subr.mxu0 0.0
    %268 = vmatpush1.msra.mxu0 %v229
    %269 = vmatprep.subr.mxu0 0.0
    %270 = vmatpush1.msra.mxu0 %v228
    %271 = vmatprep.subr.mxu0 0.0
    %272 = vmatpush1.msra.mxu0 %v227
    %273 = vmatprep.subr.mxu0 0.0
    %274 = vmatpush1.msra.mxu0 %v226
    %275 = vmatprep.subr.mxu0 0.0
    %276 = vmatpush1.msra.mxu0 %v225
    %277 = vmatprep.subr.mxu0 0.0
    %278 = vmatpush1.msra.mxu0 %v224
    %279 = vmatprep.subr.mxu0 0.0
    %280 = vmatpush2.msra.mxu0 0.0
    %281 = vmatprep.subr.mxu0 0.0
    %282 = vmatpush2.msra.mxu0 0.0
    %283 = vmatprep.subr.mxu0 0.0
    %284 = vmatpush2.msra.mxu0 0.0
    %285 = vmatprep.subr.mxu0 0.0
    %286 = vmatpush2.msra.mxu0 0.0
    %287 = vmatprep.subr.mxu0 0.0
    %288 = vmatpush2.msra.mxu0 0.0
    %289 = vmatprep.subr.mxu0 0.0
    %290 = vmatpush2.msra.mxu0 0.0
    %291 = vmatprep.subr.mxu0 0.0
    %292 = vmatpush2.msra.mxu0 0.0
    %293 = vmatprep.subr.mxu0 0.0
    %294 = vmatpush2.msra.mxu0 0.0
    %295 = vmatprep.subr.mxu0 0.0
    %296 = vmatpush2.msra.mxu0 0.0
    %297 = vmatprep.subr.mxu0 0.0
    %298 = vmatpush2.msra.mxu0 0.0
    %299 = vmatprep.subr.mxu0 0.0
    %300 = vmatpush2.msra.mxu0 0.0
    %301 = vmatprep.subr.mxu0 0.0
    %302 = vmatpush2.msra.mxu0 0.0
    %303 = vmatprep.subr.mxu0 0.0
    %304 = vmatpush2.msra.mxu0 0.0
    %305 = vmatprep.subr.mxu0 0.0
    %306 = vmatpush2.msra.mxu0 0.0
    %307 = vmatprep.subr.mxu0 0.0
    %308 = vmatpush2.msra.mxu0 0.0
    %309 = vmatprep.subr.mxu0 0.0
    %310 = vmatpush2.msra.mxu0 0.0
    %311 = vmatprep.mubr.f32.mxu0 0.0
    %312 = vmatmul.mubr.f32.gmra.mxu0 %v223
    %v313 = vpop.f32.mrf.mxu0
    %v314 = vadd.f32 %v245, %v313
    %v315 = vpop.f32.mrf.mxu0
    %316 = vdwg.mxu0
    %v317 = vmax.f32 %v314, 0.0
    %v318 = vld [vmem:[#allocation12] sm:$0xff]
    %v319 = vld [vmem:[#allocation12 + $0x8] sm:$0xff]
    %v320 = vld [vmem:[#allocation12 + $0x10] sm:$0xff]
    %v321 = vld [vmem:[#allocation12 + $0x18] sm:$0xff]
    %v322 = vld [vmem:[#allocation12 + $0x20] sm:$0xff]
    %v323 = vld [vmem:[#allocation12 + $0x28] sm:$0xff]
    %v324 = vld [vmem:[#allocation12 + $0x30] sm:$0xff]
    %v325 = vld [vmem:[#allocation12 + $0x38] sm:$0xff]
    %v326 = vld [vmem:[#allocation12 + $0x40] sm:$0xff]
    %v327 = vld [vmem:[#allocation12 + $0x48] sm:$0xff]
    %v328 = vld [vmem:[#allocation12 + $0x50] sm:$0xff]
    %v329 = vld [vmem:[#allocation12 + $0x58] sm:$0xff]
    %v330 = vld [vmem:[#allocation12 + $0x60] sm:$0xff]
    %v331 = vld [vmem:[#allocation12 + $0x68] sm:$0xff]
    %v332 = vld [vmem:[#allocation12 + $0x70] sm:$0xff]
    %v333 = vld [vmem:[#allocation12 + $0x78] sm:$0xff]
    %v334 = vld [vmem:[%s5] sm:$0x1]
    %v336 = vlaneseq
    %v337 = vshrl.u32 %v336, 7
    %v338 = vsub.s32 0, %v337
    %v339 = vrot.slane %v334, %v338
    %341 = vmatprep.subr.mxu0 0.0
    %342 = vmatpush1.msra.mxu0 %v333
    %343 = vmatprep.subr.mxu0 0.0
    %344 = vmatpush1.msra.mxu0 %v332
    %345 = vmatprep.subr.mxu0 0.0
    %346 = vmatpush1.msra.mxu0 %v331
    %347 = vmatprep.subr.mxu0 0.0
    %348 = vmatpush1.msra.mxu0 %v330
    %349 = vmatprep.subr.mxu0 0.0
    %350 = vmatpush1.msra.mxu0 %v329
    %351 = vmatprep.subr.mxu0 0.0
    %352 = vmatpush1.msra.mxu0 %v328
    %353 = vmatprep.subr.mxu0 0.0
    %354 = vmatpush1.msra.mxu0 %v327
    %355 = vmatprep.subr.mxu0 0.0
    %356 = vmatpush1.msra.mxu0 %v326
    %357 = vmatprep.subr.mxu0 0.0
    %358 = vmatpush1.msra.mxu0 %v325
    %359 = vmatprep.subr.mxu0 0.0
    %360 = vmatpush1.msra.mxu0 %v324
    %361 = vmatprep.subr.mxu0 0.0
    %362 = vmatpush1.msra.mxu0 %v323
    %363 = vmatprep.subr.mxu0 0.0
    %364 = vmatpush1.msra.mxu0 %v322
    %365 = vmatprep.subr.mxu0 0.0
    %366 = vmatpush1.msra.mxu0 %v321
    %367 = vmatprep.subr.mxu0 0.0
    %368 = vmatpush1.msra.mxu0 %v320
    %369 = vmatprep.subr.mxu0 0.0
    %370 = vmatpush1.msra.mxu0 %v319
    %371 = vmatprep.subr.mxu0 0.0
    %372 = vmatpush1.msra.mxu0 %v318
    %373 = vmatprep.subr.mxu0 0.0
    %374 = vmatpush2.msra.mxu0 0.0
    %375 = vmatprep.subr.mxu0 0.0
    %376 = vmatpush2.msra.mxu0 0.0
    %377 = vmatprep.subr.mxu0 0.0
    %378 = vmatpush2.msra.mxu0 0.0
    %379 = vmatprep.subr.mxu0 0.0
    %380 = vmatpush2.msra.mxu0 0.0
    %381 = vmatprep.subr.mxu0 0.0
    %382 = vmatpush2.msra.mxu0 0.0
    %383 = vmatprep.subr.mxu0 0.0
    %384 = vmatpush2.msra.mxu0 0.0
    %385 = vmatprep.subr.mxu0 0.0
    %386 = vmatpush2.msra.mxu0 0.0
    %387 = vmatprep.subr.mxu0 0.0
    %388 = vmatpush2.msra.mxu0 0.0
    %389 = vmatprep.subr.mxu0 0.0
    %390 = vmatpush2.msra.mxu0 0.0
    %391 = vmatprep.subr.mxu0 0.0
    %392 = vmatpush2.msra.mxu0 0.0
    %393 = vmatprep.subr.mxu0 0.0
    %394 = vmatpush2.msra.mxu0 0.0
    %395 = vmatprep.subr.mxu0 0.0
    %396 = vmatpush2.msra.mxu0 0.0
    %397 = vmatprep.subr.mxu0 0.0
    %398 = vmatpush2.msra.mxu0 0.0
    %399 = vmatprep.subr.mxu0 0.0
    %400 = vmatpush2.msra.mxu0 0.0
    %401 = vmatprep.subr.mxu0 0.0
    %402 = vmatpush2.msra.mxu0 0.0
    %403 = vmatprep.subr.mxu0 0.0
    %404 = vmatpush2.msra.mxu0 0.0
    %405 = vmatprep.mubr.f32.mxu0 0.0
    %406 = vmatmul.mubr.f32.gmra.mxu0 %v317
    %v407 = vpop.f32.mrf.mxu0
    %v408 = vadd.f32 %v339, %v407
    %v409 = vpop.f32.mrf.mxu0
    %410 = vdwg.mxu0
    %v411 = vmax.f32 %v408, 0.0
    %v412 = vld [vmem:[#allocation14] sm:$0xff]
    %v413 = vld [vmem:[#allocation14 + $0x8] sm:$0xff]
    %v414 = vld [vmem:[#allocation14 + $0x10] sm:$0xff]
    %v415 = vld [vmem:[#allocation14 + $0x18] sm:$0xff]
    %v416 = vld [vmem:[#allocation14 + $0x20] sm:$0xff]
    %v417 = vld [vmem:[#allocation14 + $0x28] sm:$0xff]
    %v418 = vld [vmem:[#allocation14 + $0x30] sm:$0xff]
    %v419 = vld [vmem:[#allocation14 + $0x38] sm:$0xff]
    %v420 = vld [vmem:[#allocation14 + $0x40] sm:$0xff]
    %v421 = vld [vmem:[#allocation14 + $0x48] sm:$0xff]
    %v422 = vld [vmem:[#allocation14 + $0x50] sm:$0xff]
    %v423 = vld [vmem:[#allocation14 + $0x58] sm:$0xff]
    %v424 = vld [vmem:[#allocation14 + $0x60] sm:$0xff]
    %v425 = vld [vmem:[#allocation14 + $0x68] sm:$0xff]
    %v426 = vld [vmem:[#allocation14 + $0x70] sm:$0xff]
    %v427 = vld [vmem:[#allocation14 + $0x78] sm:$0xff]
    %v428 = vld [vmem:[%s7] sm:$0x1]
    %v430 = vlaneseq
    %v431 = vshrl.u32 %v430, 7
    %v432 = vsub.s32 0, %v431
    %v433 = vrot.slane %v428, %v432
    %435 = vmatprep.subr.mxu0 0.0
    %436 = vmatpush1.msra.mxu0 %v427
    %437 = vmatprep.subr.mxu0 0.0
    %438 = vmatpush1.msra.mxu0 %v426
    %439 = vmatprep.subr.mxu0 0.0
    %440 = vmatpush1.msra.mxu0 %v425
    %441 = vmatprep.subr.mxu0 0.0
    %442 = vmatpush1.msra.mxu0 %v424
    %443 = vmatprep.subr.mxu0 0.0
    %444 = vmatpush1.msra.mxu0 %v423
    %445 = vmatprep.subr.mxu0 0.0
    %446 = vmatpush1.msra.mxu0 %v422
    %447 = vmatprep.subr.mxu0 0.0
    %448 = vmatpush1.msra.mxu0 %v421
    %449 = vmatprep.subr.mxu0 0.0
    %450 = vmatpush1.msra.mxu0 %v420
    %451 = vmatprep.subr.mxu0 0.0
    %452 = vmatpush1.msra.mxu0 %v419
    %453 = vmatprep.subr.mxu0 0.0
    %454 = vmatpush1.msra.mxu0 %v418
    %455 = vmatprep.subr.mxu0 0.0
    %456 = vmatpush1.msra.mxu0 %v417
    %457 = vmatprep.subr.mxu0 0.0
    %458 = vmatpush1.msra.mxu0 %v416
    %459 = vmatprep.subr.mxu0 0.0
    %460 = vmatpush1.msra.mxu0 %v415
    %461 = vmatprep.subr.mxu0 0.0
    %462 = vmatpush1.msra.mxu0 %v414
    %463 = vmatprep.subr.mxu0 0.0
    %464 = vmatpush1.msra.mxu0 %v413
    %465 = vmatprep.subr.mxu0 0.0
    %466 = vmatpush1.msra.mxu0 %v412
    %467 = vmatprep.subr.mxu0 0.0
    %468 = vmatpush2.msra.mxu0 0.0
    %469 = vmatprep.subr.mxu0 0.0
    %470 = vmatpush2.msra.mxu0 0.0
    %471 = vmatprep.subr.mxu0 0.0
    %472 = vmatpush2.msra.mxu0 0.0
    %473 = vmatprep.subr.mxu0 0.0
    %474 = vmatpush2.msra.mxu0 0.0
    %475 = vmatprep.subr.mxu0 0.0
    %476 = vmatpush2.msra.mxu0 0.0
    %477 = vmatprep.subr.mxu0 0.0
    %478 = vmatpush2.msra.mxu0 0.0
    %479 = vmatprep.subr.mxu0 0.0
    %480 = vmatpush2.msra.mxu0 0.0
    %481 = vmatprep.subr.mxu0 0.0
    %482 = vmatpush2.msra.mxu0 0.0
    %483 = vmatprep.subr.mxu0 0.0
    %484 = vmatpush2.msra.mxu0 0.0
    %485 = vmatprep.subr.mxu0 0.0
    %486 = vmatpush2.msra.mxu0 0.0
    %487 = vmatprep.subr.mxu0 0.0
    %488 = vmatpush2.msra.mxu0 0.0
    %489 = vmatprep.subr.mxu0 0.0
    %490 = vmatpush2.msra.mxu0 0.0
    %491 = vmatprep.subr.mxu0 0.0
    %492 = vmatpush2.msra.mxu0 0.0
    %493 = vmatprep.subr.mxu0 0.0
    %494 = vmatpush2.msra.mxu0 0.0
    %495 = vmatprep.subr.mxu0 0.0
    %496 = vmatpush2.msra.mxu0 0.0
    %497 = vmatprep.subr.mxu0 0.0
    %498 = vmatpush2.msra.mxu0 0.0
    %499 = vmatprep.mubr.f32.mxu0 0.0
    %500 = vmatmul.mubr.f32.gmra.mxu0 %v411
    %v501 = vpop.f32.mrf.mxu0
    %v502 = vadd.f32 %v433, %v501
    %v503 = vpop.f32.mrf.mxu0
    %504 = vdwg.mxu0
    %v505 = vmax.f32 %v502, 0.0
    %v506 = vld [vmem:[#allocation15] sm:$0xff]
    %v507 = vld [vmem:[#allocation15 + $0x8] sm:$0xff]
    %v508 = vld [vmem:[#allocation15 + $0x10] sm:$0xff]
    %v509 = vld [vmem:[#allocation15 + $0x18] sm:$0xff]
    %v510 = vld [vmem:[#allocation15 + $0x20] sm:$0xff]
    %v511 = vld [vmem:[#allocation15 + $0x28] sm:$0xff]
    %v512 = vld [vmem:[#allocation15 + $0x30] sm:$0xff]
    %v513 = vld [vmem:[#allocation15 + $0x38] sm:$0xff]
    %v514 = vld [vmem:[#allocation15 + $0x40] sm:$0xff]
    %v515 = vld [vmem:[#allocation15 + $0x48] sm:$0xff]
    %v516 = vld [vmem:[#allocation15 + $0x50] sm:$0xff]
    %v517 = vld [vmem:[#allocation15 + $0x58] sm:$0xff]
    %v518 = vld [vmem:[#allocation15 + $0x60] sm:$0xff]
    %v519 = vld [vmem:[#allocation15 + $0x68] sm:$0xff]
    %v520 = vld [vmem:[#allocation15 + $0x70] sm:$0xff]
    %v521 = vld [vmem:[#allocation15 + $0x78] sm:$0xff]
    %v522 = vld [vmem:[%s9] sm:$0x1]
    %v524 = vlaneseq
    %v525 = vshrl.u32 %v524, 7
    %v526 = vsub.s32 0, %v525
    %v527 = vrot.slane %v522, %v526
    %529 = vmatprep.subr.mxu0 0.0
    %530 = vmatpush1.msra.mxu0 %v521
    %531 = vmatprep.subr.mxu0 0.0
    %532 = vmatpush1.msra.mxu0 %v520
    %533 = vmatprep.subr.mxu0 0.0
    %534 = vmatpush1.msra.mxu0 %v519
    %535 = vmatprep.subr.mxu0 0.0
    %536 = vmatpush1.msra.mxu0 %v518
    %537 = vmatprep.subr.mxu0 0.0
    %538 = vmatpush1.msra.mxu0 %v517
    %539 = vmatprep.subr.mxu0 0.0
    %540 = vmatpush1.msra.mxu0 %v516
    %541 = vmatprep.subr.mxu0 0.0
    %542 = vmatpush1.msra.mxu0 %v515
    %543 = vmatprep.subr.mxu0 0.0
    %544 = vmatpush1.msra.mxu0 %v514
    %545 = vmatprep.subr.mxu0 0.0
    %546 = vmatpush1.msra.mxu0 %v513
    %547 = vmatprep.subr.mxu0 0.0
    %548 = vmatpush1.msra.mxu0 %v512
    %549 = vmatprep.subr.mxu0 0.0
    %550 = vmatpush1.msra.mxu0 %v511
    %551 = vmatprep.subr.mxu0 0.0
    %552 = vmatpush1.msra.mxu0 %v510
    %553 = vmatprep.subr.mxu0 0.0
    %554 = vmatpush1.msra.mxu0 %v509
    %555 = vmatprep.subr.mxu0 0.0
    %556 = vmatpush1.msra.mxu0 %v508
    %557 = vmatprep.subr.mxu0 0.0
    %558 = vmatpush1.msra.mxu0 %v507
    %559 = vmatprep.subr.mxu0 0.0
    %560 = vmatpush1.msra.mxu0 %v506
    %561 = vmatprep.subr.mxu0 0.0
    %562 = vmatpush2.msra.mxu0 0.0
    %563 = vmatprep.subr.mxu0 0.0
    %564 = vmatpush2.msra.mxu0 0.0
    %565 = vmatprep.subr.mxu0 0.0
    %566 = vmatpush2.msra.mxu0 0.0
    %567 = vmatprep.subr.mxu0 0.0
    %568 = vmatpush2.msra.mxu0 0.0
    %569 = vmatprep.subr.mxu0 0.0
    %570 = vmatpush2.msra.mxu0 0.0
    %571 = vmatprep.subr.mxu0 0.0
    %572 = vmatpush2.msra.mxu0 0.0
    %573 = vmatprep.subr.mxu0 0.0
    %574 = vmatpush2.msra.mxu0 0.0
    %575 = vmatprep.subr.mxu0 0.0
    %576 = vmatpush2.msra.mxu0 0.0
    %577 = vmatprep.subr.mxu0 0.0
    %578 = vmatpush2.msra.mxu0 0.0
    %579 = vmatprep.subr.mxu0 0.0
    %580 = vmatpush2.msra.mxu0 0.0
    %581 = vmatprep.subr.mxu0 0.0
    %582 = vmatpush2.msra.mxu0 0.0
    %583 = vmatprep.subr.mxu0 0.0
    %584 = vmatpush2.msra.mxu0 0.0
    %585 = vmatprep.subr.mxu0 0.0
    %586 = vmatpush2.msra.mxu0 0.0
    %587 = vmatprep.subr.mxu0 0.0
    %588 = vmatpush2.msra.mxu0 0.0
    %589 = vmatprep.subr.mxu0 0.0
    %590 = vmatpush2.msra.mxu0 0.0
    %591 = vmatprep.subr.mxu0 0.0
    %592 = vmatpush2.msra.mxu0 0.0
    %593 = vmatprep.mubr.f32.mxu0 0.0
    %594 = vmatmul.mubr.f32.gmra.mxu0 %v505
    %v595 = vpop.f32.mrf.mxu0
    %v596 = vadd.f32 %v527, %v595
    %v597 = vpop.f32.mrf.mxu0
    %598 = vdwg.mxu0
    %599 = vst [vmem:[%s12] sm:$0xff] %v596
    // Predicated region
    $region70: #{mlp_pallas.2} parent=1 // pred_check
      _
    $region71: #{mlp_pallas.2} parent=1 // pred_check_branch
      %601 = sbr.rel (0) target = $region73
    $region72: #{mlp_pallas.2} parent=1 // pred_region
      _
    $region73: #{mlp_pallas.2} parent=1 // pred_fallthru
      _
    // Predicated region
    $region74: #{mlp_pallas.2} parent=1 // pred_check
      _
    $region75: #{mlp_pallas.2} parent=1 // pred_check_branch
      %603 = sbr.rel (0) target = $region77
    $region76: #{mlp_pallas.2} parent=1 // pred_region
      _
    $region77: #{mlp_pallas.2} parent=1 // pred_fallthru
      _
    %604 = vsyncpa [#allocation8], 1
    %605 = vsyncpa [#allocation10], 1
    %606 = vsyncpa [#allocation13], 1
    %607 = vsyncpa [#allocation16], 1

</llo_original>
